<compile_context>
chip_gen: v7x
topology: tpu7x:2x2x1
jax: 0.10.0
libtpu: 0.0.40
codegen_flags: <defaults>
</compile_context>

<pallas_src>
import math
from functools import partial

import jax
import jax.numpy as jnp
from jax.experimental import pallas as pl
from jax.experimental.pallas import tpu as pltpu

HIDDEN = 128
NEG_FILL = -1e30          # bias for padded value-head atoms: exp underflows to exactly 0


def _round_up(v, m):
    return ((v + m - 1) // m) * m


# ---------------------------------------------------------------------------
# Pallas kernel: fused 3-layer MLP, dueling combine, per-action softmax
# ---------------------------------------------------------------------------
def rainbow_mlp_kernel(x_ref, w1_ref, b1_ref, w2_ref, b2_ref, w3_ref, b3_ref,
                       o_ref, *, action_dim, npad):
    f32 = jnp.float32
    bf16 = jnp.bfloat16

    # ---- fused layer 1: (TB, D) @ (D, 2H) -- value+advantage in one MXU pass ----
    x = x_ref[...].astype(bf16)
    h = jnp.dot(x, w1_ref[...], preferred_element_type=f32) + b1_ref[...]
    h = jnp.maximum(h, 0.0)

    # ---- fused layer 2: block-diagonal (2H, 2H) ----
    h = jnp.dot(h.astype(bf16), w2_ref[...], preferred_element_type=f32) + b2_ref[...]
    h = jnp.maximum(h, 0.0)

    # ---- fused layer 3: heads [ value | adv_0 | ... | adv_{A-1} ], each NPAD lanes ----
    y = jnp.dot(h.astype(bf16), w3_ref[...], preferred_element_type=f32) + b3_ref[...]

    v = y[:, :npad]                                                   # aligned slice, free
    adv = [y[:, (1 + a) * npad:(2 + a) * npad] for a in range(action_dim)]  # aligned slices

    adv_sum = adv[0]
    for a in range(1, action_dim):
        adv_sum = adv_sum + adv[a]
    # v - mean_a(adv); padded lanes: v = NEG_FILL, adv = 0 -> stays NEG_FILL
    base = v - adv_sum * (1.0 / action_dim)

    # ---- per-action softmax written straight into aligned slices of the output slab ----
    for a in range(action_dim):
        q = base + adv[a]
        q = q - jnp.max(q, axis=-1, keepdims=True)
        e = jnp.exp(q)                                                # padded atoms -> exactly 0
        inv = pl.reciprocal(jnp.sum(e, axis=-1, keepdims=True), approx=False)
        o_ref[:, a * npad:(a + 1) * npad] = e * inv                   # unmasked, vreg-aligned vst


# ---------------------------------------------------------------------------
# Wrapper
# ---------------------------------------------------------------------------
def rainbow_mlp_forward(x, fp, action_dim, n_atoms):
    """Returns q_dist of shape (B, action_dim, n_atoms), matching the PyTorch forward."""
    B, D = x.shape
    npad = fp["npad"]
    out_w = action_dim * npad

    # Batch tiling: single block for small B; for large B use >=2 grid steps (megacore on v7x),
    # TB a multiple of 8, capped at 1024 rows (weights + blocks stay far below the 32 MiB
    # scoped-VMEM default even on v7x's 64 MiB VMEM).
    if B <= 256:
        TB = B
    else:
        TB = min(1024, _round_up(-(-B // 2), 8))
    grid = (pl.cdiv(B, TB),)

    w1, b1, w2, b2, w3, b3 = (fp[k] for k in ("w1", "b1", "w2", "b2", "w3", "b3"))

    def _const(arr):   # weights/biases: whole array resident, constant index map
        return pl.BlockSpec(arr.shape, lambda i: (0, 0))

    kernel = partial(rainbow_mlp_kernel, action_dim=action_dim, npad=npad)

    out_flat = pl.pallas_call(
        kernel,
        out_shape=jax.ShapeDtypeStruct((B, out_w), jnp.float32),
        grid=grid,
        in_specs=[
            pl.BlockSpec((TB, D), lambda i: (i, 0)),
            _const(w1), _const(b1),
            _const(w2), _const(b2),
            _const(w3), _const(b3),
        ],
        out_specs=pl.BlockSpec((TB, out_w), lambda i: (i, 0)),
        compiler_params=pltpu.CompilerParams(dimension_semantics=("parallel",)),
    )(x, w1, b1, w2, b2, w3, b3)

    # (B, A*NPAD) -> (B, A, NPAD) is a free row-major reshape; drop padded atoms outside the kernel.
    return out_flat.reshape(B, action_dim, npad)[:, :, :n_atoms]


# ---------------------------------------------------------------------------
# Deterministic parameter construction (mirrors NoisyLinear init, training mode)
# ---------------------------------------------------------------------------
def _scale_noise(key, size):
    x = jax.random.normal(key, (size,), dtype=jnp.float32)
    return jnp.sign(x) * jnp.sqrt(jnp.abs(x))


def noisy_linear_params(key, in_f, out_f, std_init=0.5):
    k1, k2, k3, k4 = jax.random.split(key, 4)
    mu_range = 1.0 / math.sqrt(in_f)
    w_mu = jax.random.uniform(k1, (out_f, in_f), jnp.float32, -mu_range, mu_range)
    w_sigma = jnp.full((out_f, in_f), std_init / math.sqrt(in_f), jnp.float32)
    b_mu = jax.random.uniform(k2, (out_f,), jnp.float32, -mu_range, mu_range)
    b_sigma = jnp.full((out_f,), std_init / math.sqrt(out_f), jnp.float32)
    eps_in = _scale_noise(k3, in_f)
    eps_out = _scale_noise(k4, out_f)
    # training-mode effective parameters (factorized Gaussian noise)
    w = w_mu + w_sigma * jnp.outer(eps_out, eps_in)   # (out, in), torch convention
    b = b_mu + b_sigma * eps_out                      # (out,)
    return w.T, b.reshape(1, out_f)                   # (in, out), (1, out) for x @ W + b


def make_params(key, input_dim, action_dim, n_atoms):
    keys = jax.random.split(key, 6)
    wv1, bv1 = noisy_linear_params(keys[0], input_dim, HIDDEN)
    wv2, bv2 = noisy_linear_params(keys[1], HIDDEN, HIDDEN)
    wv3, bv3 = noisy_linear_params(keys[2], HIDDEN, n_atoms)
    wa1, ba1 = noisy_linear_params(keys[3], input_dim, HIDDEN)
    wa2, ba2 = noisy_linear_params(keys[4], HIDDEN, HIDDEN)
    wa3, ba3 = noisy_linear_params(keys[5], HIDDEN, action_dim * n_atoms)
    return {
        "wv1": wv1, "bv1": bv1, "wv2": wv2, "bv2": bv2, "wv3": wv3, "bv3": bv3,
        "wa1": wa1, "ba1": ba1, "wa2": wa2, "ba2": ba2, "wa3": wa3, "ba3": ba3,
    }


def fuse_params(p, action_dim, n_atoms):
    """Build fused (value||advantage) weights with lane-padded heads.

    bf16 weights for the MXU, f32 biases. Each per-head atom segment is padded to
    NPAD = round_up(n_atoms, 128) lanes so every slice / store in the kernel is vreg-aligned.
    """
    H = HIDDEN
    npad = _round_up(n_atoms, 128)
    heads = 1 + action_dim

    w1 = jnp.concatenate([p["wv1"], p["wa1"]], axis=1)                 # (D, 2H)
    b1 = jnp.concatenate([p["bv1"], p["ba1"]], axis=1)                 # (1, 2H)

    w2 = jnp.zeros((2 * H, 2 * H), jnp.float32)
    w2 = w2.at[:H, :H].set(p["wv2"]).at[H:, H:].set(p["wa2"])          # blockdiag (2H, 2H)
    b2 = jnp.concatenate([p["bv2"], p["ba2"]], axis=1)                 # (1, 2H)

    w3 = jnp.zeros((2 * H, heads * npad), jnp.float32)
    b3 = jnp.zeros((1, heads * npad), jnp.float32)
    # value head: real atoms in lanes [0:n_atoms]; padded value lanes get NEG_FILL so they
    # come out of the dueling combine at ~-1e30 and underflow to 0 under softmax.
    w3 = w3.at[:H, :n_atoms].set(p["wv3"])
    b3 = b3.at[:, :n_atoms].set(p["bv3"])
    b3 = b3.at[:, n_atoms:npad].set(NEG_FILL)
    # advantage heads: padded lanes stay exactly 0 so they cancel in mean_a(adv).
    for a in range(action_dim):
        col = (1 + a) * npad
        w3 = w3.at[H:, col:col + n_atoms].set(p["wa3"][:, a * n_atoms:(a + 1) * n_atoms])
        b3 = b3.at[:, col:col + n_atoms].set(p["ba3"][:, a * n_atoms:(a + 1) * n_atoms])

    return {
        "w1": w1.astype(jnp.bfloat16), "b1": b1,
        "w2": w2.astype(jnp.bfloat16), "b2": b2,
        "w3": w3.astype(jnp.bfloat16), "b3": b3,
        "npad": npad,
    }


# ---------------------------------------------------------------------------
# Plain-JAX f32 reference (mirrors the PyTorch forward exactly)
# ---------------------------------------------------------------------------
def ref_forward(x, p, action_dim, n_atoms):
    relu = jax.nn.relu
    h = relu(x @ p["wv1"] + p["bv1"])
    h = relu(h @ p["wv2"] + p["bv2"])
    v = (h @ p["wv3"] + p["bv3"]).reshape(-1, 1, n_atoms)

    g = relu(x @ p["wa1"] + p["ba1"])
    g = relu(g @ p["wa2"] + p["ba2"])
    adv = (g @ p["wa3"] + p["ba3"]).reshape(-1, action_dim, n_atoms)

    q_atoms = v + adv - adv.mean(axis=1, keepdims=True)
    return jax.nn.softmax(q_atoms, axis=2)


if __name__ == "__main__":
    # small shapes consistent with the module
    B, INPUT_DIM, ACTION_DIM, N_ATOMS = 8, 16, 4, 51

    key = jax.random.PRNGKey(0)
    k_params, k_x = jax.random.split(key)
    params = make_params(k_params, INPUT_DIM, ACTION_DIM, N_ATOMS)
    fused = fuse_params(params, ACTION_DIM, N_ATOMS)
    x = jax.random.normal(k_x, (B, INPUT_DIM), dtype=jnp.float32)

    q_dist = jax.block_until_ready(rainbow_mlp_forward(x, fused, ACTION_DIM, N_ATOMS))
    q_ref = jax.block_until_ready(ref_forward(x, params, ACTION_DIM, N_ATOMS))

    assert q_dist.shape == (B, ACTION_DIM, N_ATOMS)
    # bf16 MXU operands -> relaxed tolerance vs the f32 reference; softmax itself is exact-f32.
    assert jnp.allclose(q_dist, q_ref, atol=2e-2), "mismatch vs f32 JAX reference"
    assert jnp.allclose(jnp.sum(q_dist, axis=-1), 1.0, atol=1e-3), "softmax rows must sum to ~1"

    print("KERNEL_OK")
</pallas_src>

<mosaic_0001>
module attributes {stable_mosaic.version = 11 : i64} {
  func.func @rainbow_mlp_kernel(%arg0: i32, %arg1: memref<8x16xf32, #tpu.memory_space<vmem>>, %arg2: memref<16x256xbf16, #tpu.memory_space<vmem>>, %arg3: memref<1x256xf32, #tpu.memory_space<vmem>>, %arg4: memref<256x256xbf16, #tpu.memory_space<vmem>>, %arg5: memref<1x256xf32, #tpu.memory_space<vmem>>, %arg6: memref<256x640xbf16, #tpu.memory_space<vmem>>, %arg7: memref<1x640xf32, #tpu.memory_space<vmem>>, %arg8: memref<8x512xf32, #tpu.memory_space<vmem>>) attributes {dimension_semantics = [#tpu.dimension_semantics<parallel>], iteration_bounds = array<i64: 1>, scalar_prefetch = 0 : i64, scratch_operands = 0 : i64, tpu.core_type = #tpu.core_type<tc>, window_params = [{transform_indices = @transform_0, window_bounds = array<i64: 8, 16>}, {pipeline_mode = #tpu.pipeline_mode<synchronous>, transform_indices = @transform_1, window_bounds = array<i64: 16, 256>}, {pipeline_mode = #tpu.pipeline_mode<synchronous>, transform_indices = @transform_2, window_bounds = array<i64: 1, 256>}, {pipeline_mode = #tpu.pipeline_mode<synchronous>, transform_indices = @transform_3, window_bounds = array<i64: 256, 256>}, {pipeline_mode = #tpu.pipeline_mode<synchronous>, transform_indices = @transform_4, window_bounds = array<i64: 1, 256>}, {pipeline_mode = #tpu.pipeline_mode<synchronous>, transform_indices = @transform_5, window_bounds = array<i64: 256, 640>}, {pipeline_mode = #tpu.pipeline_mode<synchronous>, transform_indices = @transform_6, window_bounds = array<i64: 1, 640>}, {transform_indices = @transform_7, window_bounds = array<i64: 8, 512>}]} {
    %c0 = arith.constant 0 : index
    %c0_0 = arith.constant 0 : index
    %0 = vector.load %arg1[%c0, %c0_0] : memref<8x16xf32, #tpu.memory_space<vmem>>, vector<8x16xf32>
    %1 = arith.truncf %0 : vector<8x16xf32> to vector<8x16xbf16>
    %c0_1 = arith.constant 0 : index
    %c0_2 = arith.constant 0 : index
    %2 = vector.load %arg2[%c0_1, %c0_2] : memref<16x256xbf16, #tpu.memory_space<vmem>>, vector<16x256xbf16>
    %cst = arith.constant dense<0.000000e+00> : vector<8x256xf32>
    %3 = tpu.matmul %1, %2, %cst {dimension_numbers = #tpu.dot_dimension_numbers<[1], [0], [0], [1], [0, 0, 1, 1], [], []>} : vector<8x16xbf16>, vector<16x256xbf16>, vector<8x256xf32> -> vector<8x256xf32>
    %c0_3 = arith.constant 0 : index
    %c0_4 = arith.constant 0 : index
    %4 = vector.load %arg3[%c0_3, %c0_4] : memref<1x256xf32, #tpu.memory_space<vmem>>, vector<1x256xf32>
    %5 = vector.broadcast %4 : vector<1x256xf32> to vector<8x256xf32>
    %6 = arith.addf %3, %5 : vector<8x256xf32>
    %cst_5 = arith.constant 0.000000e+00 : f32
    %7 = vector.broadcast %cst_5 : f32 to vector<8x256xf32>
    %8 = arith.maximumf %6, %7 : vector<8x256xf32>
    %9 = arith.truncf %8 : vector<8x256xf32> to vector<8x256xbf16>
    %c0_6 = arith.constant 0 : index
    %c0_7 = arith.constant 0 : index
    %10 = vector.load %arg4[%c0_6, %c0_7] : memref<256x256xbf16, #tpu.memory_space<vmem>>, vector<256x256xbf16>
    %cst_8 = arith.constant dense<0.000000e+00> : vector<8x256xf32>
    %11 = tpu.matmul %9, %10, %cst_8 {dimension_numbers = #tpu.dot_dimension_numbers<[1], [0], [0], [1], [0, 0, 1, 1], [], []>} : vector<8x256xbf16>, vector<256x256xbf16>, vector<8x256xf32> -> vector<8x256xf32>
    %c0_9 = arith.constant 0 : index
    %c0_10 = arith.constant 0 : index
    %12 = vector.load %arg5[%c0_9, %c0_10] : memref<1x256xf32, #tpu.memory_space<vmem>>, vector<1x256xf32>
    %13 = vector.broadcast %12 : vector<1x256xf32> to vector<8x256xf32>
    %14 = arith.addf %11, %13 : vector<8x256xf32>
    %cst_11 = arith.constant 0.000000e+00 : f32
    %15 = vector.broadcast %cst_11 : f32 to vector<8x256xf32>
    %16 = arith.maximumf %14, %15 : vector<8x256xf32>
    %17 = arith.truncf %16 : vector<8x256xf32> to vector<8x256xbf16>
    %c0_12 = arith.constant 0 : index
    %c0_13 = arith.constant 0 : index
    %18 = vector.load %arg6[%c0_12, %c0_13] : memref<256x640xbf16, #tpu.memory_space<vmem>>, vector<256x640xbf16>
    %cst_14 = arith.constant dense<0.000000e+00> : vector<8x640xf32>
    %19 = tpu.matmul %17, %18, %cst_14 {dimension_numbers = #tpu.dot_dimension_numbers<[1], [0], [0], [1], [0, 0, 1, 1], [], []>} : vector<8x256xbf16>, vector<256x640xbf16>, vector<8x640xf32> -> vector<8x640xf32>
    %c0_15 = arith.constant 0 : index
    %c0_16 = arith.constant 0 : index
    %20 = vector.load %arg7[%c0_15, %c0_16] : memref<1x640xf32, #tpu.memory_space<vmem>>, vector<1x640xf32>
    %21 = vector.broadcast %20 : vector<1x640xf32> to vector<8x640xf32>
    %22 = arith.addf %19, %21 : vector<8x640xf32>
    %23 = vector.extract_strided_slice %22 {offsets = [0, 0], sizes = [8, 128], strides = [1, 1]} : vector<8x640xf32> to vector<8x128xf32>
    %24 = vector.extract_strided_slice %22 {offsets = [0, 128], sizes = [8, 128], strides = [1, 1]} : vector<8x640xf32> to vector<8x128xf32>
    %25 = vector.extract_strided_slice %22 {offsets = [0, 256], sizes = [8, 128], strides = [1, 1]} : vector<8x640xf32> to vector<8x128xf32>
    %26 = vector.extract_strided_slice %22 {offsets = [0, 384], sizes = [8, 128], strides = [1, 1]} : vector<8x640xf32> to vector<8x128xf32>
    %27 = vector.extract_strided_slice %22 {offsets = [0, 512], sizes = [8, 128], strides = [1, 1]} : vector<8x640xf32> to vector<8x128xf32>
    %28 = arith.addf %24, %25 : vector<8x128xf32>
    %29 = arith.addf %28, %26 : vector<8x128xf32>
    %30 = arith.addf %29, %27 : vector<8x128xf32>
    %cst_17 = arith.constant 2.500000e-01 : f32
    %31 = vector.broadcast %cst_17 : f32 to vector<8x128xf32>
    %32 = arith.mulf %30, %31 : vector<8x128xf32>
    %33 = arith.subf %23, %32 : vector<8x128xf32>
    %34 = arith.addf %33, %24 : vector<8x128xf32>
    %cst_18 = arith.constant dense<0xFF800000> : vector<8xf32>
    %35 = vector.multi_reduction <maximumf>, %34, %cst_18 [1] : vector<8x128xf32> to vector<8xf32>
    %36 = vector.shape_cast %35 : vector<8xf32> to vector<8x1xf32>
    %37 = vector.broadcast %36 : vector<8x1xf32> to vector<8x128xf32>
    %38 = arith.subf %34, %37 : vector<8x128xf32>
    %39 = math.exp %38 : vector<8x128xf32>
    %cst_19 = arith.constant dense<0.000000e+00> : vector<8xf32>
    %40 = vector.multi_reduction <add>, %39, %cst_19 [1] : vector<8x128xf32> to vector<8xf32>
    %41 = vector.shape_cast %40 : vector<8xf32> to vector<8x1xf32>
    %42 = tpu.reciprocal %41 : vector<8x1xf32> -> vector<8x1xf32>
    %43 = vector.broadcast %42 : vector<8x1xf32> to vector<8x128xf32>
    %44 = arith.mulf %39, %43 : vector<8x128xf32>
    %c0_20 = arith.constant 0 : index
    %c0_21 = arith.constant 0 : index
    %45 = vector.load %arg8[%c0_20, %c0_21] : memref<8x512xf32, #tpu.memory_space<vmem>>, vector<8x128xf32>
    tpu.vector_store %arg8[%c0_20, %c0_21], %44 {strides = array<i32>} : memref<8x512xf32, #tpu.memory_space<vmem>>, vector<8x128xf32>,
    %46 = arith.addf %33, %25 : vector<8x128xf32>
    %cst_22 = arith.constant dense<0xFF800000> : vector<8xf32>
    %47 = vector.multi_reduction <maximumf>, %46, %cst_22 [1] : vector<8x128xf32> to vector<8xf32>
    %48 = vector.shape_cast %47 : vector<8xf32> to vector<8x1xf32>
    %49 = vector.broadcast %48 : vector<8x1xf32> to vector<8x128xf32>
    %50 = arith.subf %46, %49 : vector<8x128xf32>
    %51 = math.exp %50 : vector<8x128xf32>
    %cst_23 = arith.constant dense<0.000000e+00> : vector<8xf32>
    %52 = vector.multi_reduction <add>, %51, %cst_23 [1] : vector<8x128xf32> to vector<8xf32>
    %53 = vector.shape_cast %52 : vector<8xf32> to vector<8x1xf32>
    %54 = tpu.reciprocal %53 : vector<8x1xf32> -> vector<8x1xf32>
    %55 = vector.broadcast %54 : vector<8x1xf32> to vector<8x128xf32>
    %56 = arith.mulf %51, %55 : vector<8x128xf32>
    %c0_24 = arith.constant 0 : index
    %c128 = arith.constant 128 : index
    %57 = vector.load %arg8[%c0_24, %c128] : memref<8x512xf32, #tpu.memory_space<vmem>>, vector<8x128xf32>
    tpu.vector_store %arg8[%c0_24, %c128], %56 {strides = array<i32>} : memref<8x512xf32, #tpu.memory_space<vmem>>, vector<8x128xf32>,
    %58 = arith.addf %33, %26 : vector<8x128xf32>
    %cst_25 = arith.constant dense<0xFF800000> : vector<8xf32>
    %59 = vector.multi_reduction <maximumf>, %58, %cst_25 [1] : vector<8x128xf32> to vector<8xf32>
    %60 = vector.shape_cast %59 : vector<8xf32> to vector<8x1xf32>
    %61 = vector.broadcast %60 : vector<8x1xf32> to vector<8x128xf32>
    %62 = arith.subf %58, %61 : vector<8x128xf32>
    %63 = math.exp %62 : vector<8x128xf32>
    %cst_26 = arith.constant dense<0.000000e+00> : vector<8xf32>
    %64 = vector.multi_reduction <add>, %63, %cst_26 [1] : vector<8x128xf32> to vector<8xf32>
    %65 = vector.shape_cast %64 : vector<8xf32> to vector<8x1xf32>
    %66 = tpu.reciprocal %65 : vector<8x1xf32> -> vector<8x1xf32>
    %67 = vector.broadcast %66 : vector<8x1xf32> to vector<8x128xf32>
    %68 = arith.mulf %63, %67 : vector<8x128xf32>
    %c0_27 = arith.constant 0 : index
    %c256 = arith.constant 256 : index
    %69 = vector.load %arg8[%c0_27, %c256] : memref<8x512xf32, #tpu.memory_space<vmem>>, vector<8x128xf32>
    tpu.vector_store %arg8[%c0_27, %c256], %68 {strides = array<i32>} : memref<8x512xf32, #tpu.memory_space<vmem>>, vector<8x128xf32>,
    %70 = arith.addf %33, %27 : vector<8x128xf32>
    %cst_28 = arith.constant dense<0xFF800000> : vector<8xf32>
    %71 = vector.multi_reduction <maximumf>, %70, %cst_28 [1] : vector<8x128xf32> to vector<8xf32>
    %72 = vector.shape_cast %71 : vector<8xf32> to vector<8x1xf32>
    %73 = vector.broadcast %72 : vector<8x1xf32> to vector<8x128xf32>
    %74 = arith.subf %70, %73 : vector<8x128xf32>
    %75 = math.exp %74 : vector<8x128xf32>
    %cst_29 = arith.constant dense<0.000000e+00> : vector<8xf32>
    %76 = vector.multi_reduction <add>, %75, %cst_29 [1] : vector<8x128xf32> to vector<8xf32>
    %77 = vector.shape_cast %76 : vector<8xf32> to vector<8x1xf32>
    %78 = tpu.reciprocal %77 : vector<8x1xf32> -> vector<8x1xf32>
    %79 = vector.broadcast %78 : vector<8x1xf32> to vector<8x128xf32>
    %80 = arith.mulf %75, %79 : vector<8x128xf32>
    %c0_30 = arith.constant 0 : index
    %c384 = arith.constant 384 : index
    %81 = vector.load %arg8[%c0_30, %c384] : memref<8x512xf32, #tpu.memory_space<vmem>>, vector<8x128xf32>
    tpu.vector_store %arg8[%c0_30, %c384], %80 {strides = array<i32>} : memref<8x512xf32, #tpu.memory_space<vmem>>, vector<8x128xf32>,
    return
  }
  func.func @transform_0(%arg0: i32) -> (i32, i32) {
    %c0_i32 = arith.constant 0 : i32
    %c0_i32_0 = arith.constant 0 : i32
    return %arg0, %c0_i32 : i32, i32
  }
  func.func @transform_1(%arg0: i32) -> (i32, i32) {
    %c0_i32 = arith.constant 0 : i32
    %c0_i32_0 = arith.constant 0 : i32
    %c0_i32_1 = arith.constant 0 : i32
    return %c0_i32, %c0_i32_0 : i32, i32
  }
  func.func @transform_2(%arg0: i32) -> (i32, i32) {
    %c0_i32 = arith.constant 0 : i32
    %c0_i32_0 = arith.constant 0 : i32
    %c0_i32_1 = arith.constant 0 : i32
    return %c0_i32, %c0_i32_0 : i32, i32
  }
  func.func @transform_3(%arg0: i32) -> (i32, i32) {
    %c0_i32 = arith.constant 0 : i32
    %c0_i32_0 = arith.constant 0 : i32
    %c0_i32_1 = arith.constant 0 : i32
    return %c0_i32, %c0_i32_0 : i32, i32
  }
  func.func @transform_4(%arg0: i32) -> (i32, i32) {
    %c0_i32 = arith.constant 0 : i32
    %c0_i32_0 = arith.constant 0 : i32
    %c0_i32_1 = arith.constant 0 : i32
    return %c0_i32, %c0_i32_0 : i32, i32
  }
  func.func @transform_5(%arg0: i32) -> (i32, i32) {
    %c0_i32 = arith.constant 0 : i32
    %c0_i32_0 = arith.constant 0 : i32
    %c0_i32_1 = arith.constant 0 : i32
    return %c0_i32, %c0_i32_0 : i32, i32
  }
  func.func @transform_6(%arg0: i32) -> (i32, i32) {
    %c0_i32 = arith.constant 0 : i32
    %c0_i32_0 = arith.constant 0 : i32
    %c0_i32_1 = arith.constant 0 : i32
    return %c0_i32, %c0_i32_0 : i32, i32
  }
  func.func @transform_7(%arg0: i32) -> (i32, i32) {
    %c0_i32 = arith.constant 0 : i32
    %c0_i32_0 = arith.constant 0 : i32
    return %arg0, %c0_i32 : i32, i32
  }
}

</mosaic_0001>

<llo_original>
// kernel: tpu_custom_call.1
$region0: #{tpu_custom_call.1}
  #allocation0 [shape = 'u32[]', space=smem, size = 0x4, offset = 0x4, fixed_abs, tag = 'smem constant byte address 0x4 - core index']
  #allocation1 [shape = 'u32[144,128]{1,0:T(1,128)}', space=vmem, size = 0x12000, scoped, tag = 'internal scratch']
  %s0 = inlined_call_operand.hbm [shape: f32[8,16], index: 0, kind: input, shape index: {}]
  %s1 = inlined_call_operand.hbm [shape: bf16[16,256], index: 1, kind: input, shape index: {}]
  %s2 = inlined_call_operand.vmem [shape: f32[1,256], index: 2, kind: input, shape index: {}]
  %s3 = inlined_call_operand.hbm [shape: bf16[256,256], index: 3, kind: input, shape index: {}]
  %s4 = inlined_call_operand.vmem [shape: f32[1,256], index: 4, kind: input, shape index: {}]
  %s5 = inlined_call_operand.hbm [shape: bf16[256,640], index: 5, kind: input, shape index: {}]
  %s6 = inlined_call_operand.vmem [shape: f32[1,640], index: 6, kind: input, shape index: {}]
  %s7 = inlined_call_operand.hbm [shape: f32[8,512], index: 7, kind: output, shape index: {}]
  %s8 = sld [smem:[#allocation0]]
  $region54: #{tpu_custom_call.1} parent=0
    _
  %s10 = ssub.s32 1, %s8
  %s11 = scalar_select 0, %s10, %s8
  $region1: #{tpu_custom_call.1} parent=0
    #allocation2 [shape = 'u8[4096]{0}', space=vmem, size = 0x1000, scoped, tag = 'input window, operand 0, single buffered']
    #allocation3 [shape = 's32[1]{0}', space=sflag, size = 0x4, scoped, tag = 'scoped memory for tpu_custom_call.1']
    #allocation4 [shape = 's32[1]{0}', space=sflag, size = 0x4, scoped, tag = 'scoped memory for tpu_custom_call.1']
    #allocation5 [shape = 'u8[8192]{0}', space=vmem, size = 0x2000, scoped, tag = 'input window, operand 1, single buffered']
    #allocation6 [shape = 's32[1]{0}', space=sflag, size = 0x4, scoped, tag = 'scoped memory for tpu_custom_call.1']
    #allocation7 [shape = 'u8[131072]{0}', space=vmem, size = 0x20000, scoped, tag = 'input window, operand 3, single buffered']
    #allocation8 [shape = 'u8[327680]{0}', space=vmem, size = 0x50000, scoped, tag = 'input window, operand 5, single buffered']
    #allocation9 [shape = 's32[1]{0}', space=sflag, size = 0x4, scoped, tag = 'scoped memory for tpu_custom_call.1']
    #allocation10 [shape = 'u8[16384]{0}', space=vmem, size = 0x4000, scoped, tag = 'output window, operand 0, single buffered']
    %12 = vsyncpa [#allocation3], 0
    %13 = vsyncpa [#allocation6], 0
    %14 = vsyncpa [#allocation9], 0
    %15 = vsyncpa [#allocation4], 0
    // Predicated region
    $region2: #{tpu_custom_call.1} parent=1 // pred_check
      _
    $region3: #{tpu_custom_call.1} parent=1 // pred_check_branch
      %17 = sbr.rel (0) target = $region5
    $region4: #{tpu_custom_call.1} parent=1 // pred_region
      %s19 = ssub.s32 128, 128
      %20 = vsyncadd [#allocation3], %s19
      %s22 = sshll.u32 [#allocation2], 4
      %s23 = int_to_ptr.vmem [resolvable:$true] %s22
      %25 = dma.hbm_to_vmem [thread:$0]  %s0, 128, %s23, [#allocation3]
    $region5: #{tpu_custom_call.1} parent=1 // pred_fallthru
      _
    // Predicated region
    $region6: #{tpu_custom_call.1} parent=1 // pred_check
      _
    $region7: #{tpu_custom_call.1} parent=1 // pred_check_branch
      %27 = sbr.rel (0) target = $region9
    $region8: #{tpu_custom_call.1} parent=1 // pred_region
      %s29 = ssub.s32 256, 256
      %30 = vsyncadd [#allocation6], %s29
      %s31 = sshll.u32 [#allocation5], 4
      %s32 = int_to_ptr.vmem [resolvable:$true] %s31
      %37 = dma.hbm_to_vmem [thread:$0]  %s1, 256, %s32, [#allocation6], 128, 128, 8
    $region9: #{tpu_custom_call.1} parent=1 // pred_fallthru
      _
    // Predicated region
    $region10: #{tpu_custom_call.1} parent=1 // pred_check
      _
    $region11: #{tpu_custom_call.1} parent=1 // pred_check_branch
      %39 = sbr.rel (0) target = $region13
    $region12: #{tpu_custom_call.1} parent=1 // pred_region
      _
    $region13: #{tpu_custom_call.1} parent=1 // pred_fallthru
      _
    // Predicated region
    $region14: #{tpu_custom_call.1} parent=1 // pred_check
      _
    $region15: #{tpu_custom_call.1} parent=1 // pred_check_branch
      %41 = sbr.rel (0) target = $region17
    $region16: #{tpu_custom_call.1} parent=1 // pred_region
      %s43 = ssub.s32 4096, 4096
      %44 = vsyncadd [#allocation6], %s43
      %s45 = sshll.u32 [#allocation7], 4
      %s46 = int_to_ptr.vmem [resolvable:$true] %s45
      %51 = dma.hbm_to_vmem [thread:$0]  %s3, 4096, %s46, [#allocation6], 128, 128, 8
    $region17: #{tpu_custom_call.1} parent=1 // pred_fallthru
      _
    // Predicated region
    $region18: #{tpu_custom_call.1} parent=1 // pred_check
      _
    $region19: #{tpu_custom_call.1} parent=1 // pred_check_branch
      %53 = sbr.rel (0) target = $region21
    $region20: #{tpu_custom_call.1} parent=1 // pred_region
      _
    $region21: #{tpu_custom_call.1} parent=1 // pred_fallthru
      _
    // Predicated region
    $region22: #{tpu_custom_call.1} parent=1 // pred_check
      _
    $region23: #{tpu_custom_call.1} parent=1 // pred_check_branch
      %55 = sbr.rel (0) target = $region25
    $region24: #{tpu_custom_call.1} parent=1 // pred_region
      %s57 = ssub.s32 10240, 10240
      %58 = vsyncadd [#allocation9], %s57
      %s59 = sshll.u32 [#allocation8], 4
      %s60 = int_to_ptr.vmem [resolvable:$true] %s59
      %65 = dma.hbm_to_vmem [thread:$0]  %s5, 10240, %s60, [#allocation9], 320, 320, 20
    $region25: #{tpu_custom_call.1} parent=1 // pred_fallthru
      _
    // Predicated region
    $region26: #{tpu_custom_call.1} parent=1 // pred_check
      _
    $region27: #{tpu_custom_call.1} parent=1 // pred_check_branch
      %67 = sbr.rel (0) target = $region29
    $region28: #{tpu_custom_call.1} parent=1 // pred_region
      _
    $region29: #{tpu_custom_call.1} parent=1 // pred_fallthru
      _
    // Predicated region
    $region30: #{tpu_custom_call.1} parent=1 // pred_check
      _
    $region31: #{tpu_custom_call.1} parent=1 // pred_check_branch
      %69 = sbr.rel (0) target = $region33
    $region32: #{tpu_custom_call.1} parent=1 // pred_region
      %70 = dma.done [#allocation3], 128
    $region33: #{tpu_custom_call.1} parent=1 // pred_fallthru
      _
    // Predicated region
    $region34: #{tpu_custom_call.1} parent=1 // pred_check
      _
    $region35: #{tpu_custom_call.1} parent=1 // pred_check_branch
      %72 = sbr.rel (0) target = $region37
    $region36: #{tpu_custom_call.1} parent=1 // pred_region
      %73 = dma.done [#allocation6], 256
    $region37: #{tpu_custom_call.1} parent=1 // pred_fallthru
      _
    // Predicated region
    $region38: #{tpu_custom_call.1} parent=1 // pred_check
      _
    $region39: #{tpu_custom_call.1} parent=1 // pred_check_branch
      %75 = sbr.rel (0) target = $region41
    $region40: #{tpu_custom_call.1} parent=1 // pred_region
      %76 = dma.done [#allocation6], 4096
    $region41: #{tpu_custom_call.1} parent=1 // pred_fallthru
      _
    // Predicated region
    $region42: #{tpu_custom_call.1} parent=1 // pred_check
      _
    $region43: #{tpu_custom_call.1} parent=1 // pred_check_branch
      %78 = sbr.rel (0) target = $region45
    $region44: #{tpu_custom_call.1} parent=1 // pred_region
      %79 = dma.done [#allocation9], 10240
    $region45: #{tpu_custom_call.1} parent=1 // pred_fallthru
      _
    %v81 = vld [vmem:[#allocation2] sm:$0xff]
    %v82 = vpack.c.bf16 %v81, %v81
    %v83 = vld [vmem:[#allocation5] sm:$0xff]
    %v84 = vld [vmem:[#allocation5 + $0x8] sm:$0xff]
    %v85 = vld [vmem:[%s2] sm:$0x3]
    %v87 = vlaneseq
    %v88 = vshrl.u32 %v87, 7
    %v89 = vsub.s32 0, %v88
    %v90 = vrot.slane %v85, %v89
    %v91 = vlaneseq
    %v92 = vshrl.u32 %v91, 7
    %v93 = vsub.s32 1, %v92
    %v94 = vrot.slane %v85, %v93
    %v99 = vunpack.c.l.b16 %v83
    %v100 = vunpack.c.h.b16 %v83
    %v101 = vunpack.c.l.b16 %v84
    %v102 = vunpack.c.h.b16 %v84
    %v103 = vpack.c.b16 %v101, %v99
    %v104 = vpack.c.b16 %v102, %v100
    %vm107 = vcmask 130048
    %v109 = vsel %vm107, %v82, 0
    %111 = vmatprep.subr.bf16.mxu0 %v104
    %112 = vmatpush1.bf16.msra.mxu0 %v103
    %113 = vmatprep.subr.bf16.mxu0 0
    %114 = vmatpush1.bf16.msra.mxu0 0
    %115 = vmatprep.subr.bf16.mxu0 0
    %116 = vmatpush1.bf16.msra.mxu0 0
    %117 = vmatprep.subr.bf16.mxu0 0
    %118 = vmatpush1.bf16.msra.mxu0 0
    %119 = vmatprep.subr.bf16.mxu0 0
    %120 = vmatpush1.bf16.msra.mxu0 0
    %121 = vmatprep.subr.bf16.mxu0 0
    %122 = vmatpush1.bf16.msra.mxu0 0
    %123 = vmatprep.subr.bf16.mxu0 0
    %124 = vmatpush1.bf16.msra.mxu0 0
    %125 = vmatprep.subr.bf16.mxu0 0
    %126 = vmatpush1.bf16.msra.mxu0 0
    %127 = vmatprep.subr.bf16.mxu0 0
    %128 = vmatpush1.bf16.msra.mxu0 0
    %129 = vmatprep.subr.bf16.mxu0 0
    %130 = vmatpush1.bf16.msra.mxu0 0
    %131 = vmatprep.subr.bf16.mxu0 0
    %132 = vmatpush1.bf16.msra.mxu0 0
    %133 = vmatprep.subr.bf16.mxu0 0
    %134 = vmatpush1.bf16.msra.mxu0 0
    %135 = vmatprep.subr.bf16.mxu0 0
    %136 = vmatpush1.bf16.msra.mxu0 0
    %137 = vmatprep.subr.bf16.mxu0 0
    %138 = vmatpush1.bf16.msra.mxu0 0
    %139 = vmatprep.subr.bf16.mxu0 0
    %140 = vmatpush1.bf16.msra.mxu0 0
    %141 = vmatprep.subr.bf16.mxu0 0
    %142 = vmatpush1.bf16.msra.mxu0 0
    %143 = vmatprep.mubr.bf16.mxu0 0
    %144 = vmatmul.mubr.bf16.gmra.mrb[0].mxu0 %v109
    %v145 = vpop.f32.mrb[0].mxu0
    %v146 = vadd.f32 %v90, %v145
    %v147 = vpop.f32.mrb[0].mxu0
    %v148 = vadd.f32 %v94, %v147
    %v149 = vpop.f32.mrb[0].mxu0
    %v150 = vpop.f32.mrb[0].mxu0
    %151 = vdwg.mxu0
    %v152 = vmax.f32 %v146, 0.0
    %v153 = vmax.f32 %v148, 0.0
    %v154 = vpack.c.bf16 %v152, %v152
    %v155 = vpack.c.bf16 %v153, %v153
    %v156 = vld [vmem:[#allocation7] sm:$0xff]
    %v157 = vld [vmem:[#allocation7 + $0x8] sm:$0xff]
    %v158 = vld [vmem:[#allocation7 + $0x10] sm:$0xff]
    %v159 = vld [vmem:[#allocation7 + $0x18] sm:$0xff]
    %v160 = vld [vmem:[#allocation7 + $0x20] sm:$0xff]
    %v161 = vld [vmem:[#allocation7 + $0x28] sm:$0xff]
    %v162 = vld [vmem:[#allocation7 + $0x30] sm:$0xff]
    %v163 = vld [vmem:[#allocation7 + $0x38] sm:$0xff]
    %v164 = vld [vmem:[#allocation7 + $0x40] sm:$0xff]
    %v165 = vld [vmem:[#allocation7 + $0x48] sm:$0xff]
    %v166 = vld [vmem:[#allocation7 + $0x50] sm:$0xff]
    %v167 = vld [vmem:[#allocation7 + $0x58] sm:$0xff]
    %v168 = vld [vmem:[#allocation7 + $0x60] sm:$0xff]
    %v169 = vld [vmem:[#allocation7 + $0x68] sm:$0xff]
    %v170 = vld [vmem:[#allocation7 + $0x70] sm:$0xff]
    %v171 = vld [vmem:[#allocation7 + $0x78] sm:$0xff]
    %v172 = vld [vmem:[#allocation7 + $0x80] sm:$0xff]
    %v173 = vld [vmem:[#allocation7 + $0x88] sm:$0xff]
    %v174 = vld [vmem:[#allocation7 + $0x90] sm:$0xff]
    %v175 = vld [vmem:[#allocation7 + $0x98] sm:$0xff]
    %v176 = vld [vmem:[#allocation7 + $0xa0] sm:$0xff]
    %v177 = vld [vmem:[#allocation7 + $0xa8] sm:$0xff]
    %v178 = vld [vmem:[#allocation7 + $0xb0] sm:$0xff]
    %v179 = vld [vmem:[#allocation7 + $0xb8] sm:$0xff]
    %v180 = vld [vmem:[#allocation7 + $0xc0] sm:$0xff]
    %v181 = vld [vmem:[#allocation7 + $0xc8] sm:$0xff]
    %v182 = vld [vmem:[#allocation7 + $0xd0] sm:$0xff]
    %v183 = vld [vmem:[#allocation7 + $0xd8] sm:$0xff]
    %v184 = vld [vmem:[#allocation7 + $0xe0] sm:$0xff]
    %v185 = vld [vmem:[#allocation7 + $0xe8] sm:$0xff]
    %v186 = vld [vmem:[#allocation7 + $0xf0] sm:$0xff]
    %v187 = vld [vmem:[#allocation7 + $0xf8] sm:$0xff]
    %v188 = vld [vmem:[%s4] sm:$0x3]
    %v190 = vlaneseq
    %v191 = vshrl.u32 %v190, 7
    %v192 = vsub.s32 0, %v191
    %v193 = vrot.slane %v188, %v192
    %v194 = vlaneseq
    %v195 = vshrl.u32 %v194, 7
    %v196 = vsub.s32 1, %v195
    %v197 = vrot.slane %v188, %v196
    %v232 = vunpack.c.l.b16 %v156
    %v233 = vunpack.c.h.b16 %v156
    %v234 = vunpack.c.l.b16 %v157
    %v235 = vunpack.c.h.b16 %v157
    %v236 = vunpack.c.l.b16 %v158
    %v237 = vunpack.c.h.b16 %v158
    %v238 = vunpack.c.l.b16 %v159
    %v239 = vunpack.c.h.b16 %v159
    %v240 = vunpack.c.l.b16 %v160
    %v241 = vunpack.c.h.b16 %v160
    %v242 = vunpack.c.l.b16 %v161
    %v243 = vunpack.c.h.b16 %v161
    %v244 = vunpack.c.l.b16 %v162
    %v245 = vunpack.c.h.b16 %v162
    %v246 = vunpack.c.l.b16 %v163
    %v247 = vunpack.c.h.b16 %v163
    %v248 = vunpack.c.l.b16 %v164
    %v249 = vunpack.c.h.b16 %v164
    %v250 = vunpack.c.l.b16 %v165
    %v251 = vunpack.c.h.b16 %v165
    %v252 = vunpack.c.l.b16 %v166
    %v253 = vunpack.c.h.b16 %v166
    %v254 = vunpack.c.l.b16 %v167
    %v255 = vunpack.c.h.b16 %v167
    %v256 = vunpack.c.l.b16 %v168
    %v257 = vunpack.c.h.b16 %v168
    %v258 = vunpack.c.l.b16 %v169
    %v259 = vunpack.c.h.b16 %v169
    %v260 = vunpack.c.l.b16 %v170
    %v261 = vunpack.c.h.b16 %v170
    %v262 = vunpack.c.l.b16 %v171
    %v263 = vunpack.c.h.b16 %v171
    %v264 = vunpack.c.l.b16 %v172
    %v265 = vunpack.c.h.b16 %v172
    %v266 = vunpack.c.l.b16 %v173
    %v267 = vunpack.c.h.b16 %v173
    %v268 = vunpack.c.l.b16 %v174
    %v269 = vunpack.c.h.b16 %v174
    %v270 = vunpack.c.l.b16 %v175
    %v271 = vunpack.c.h.b16 %v175
    %v272 = vunpack.c.l.b16 %v176
    %v273 = vunpack.c.h.b16 %v176
    %v274 = vunpack.c.l.b16 %v177
    %v275 = vunpack.c.h.b16 %v177
    %v276 = vunpack.c.l.b16 %v178
    %v277 = vunpack.c.h.b16 %v178
    %v278 = vunpack.c.l.b16 %v179
    %v279 = vunpack.c.h.b16 %v179
    %v280 = vunpack.c.l.b16 %v180
    %v281 = vunpack.c.h.b16 %v180
    %v282 = vunpack.c.l.b16 %v181
    %v283 = vunpack.c.h.b16 %v181
    %v284 = vunpack.c.l.b16 %v182
    %v285 = vunpack.c.h.b16 %v182
    %v286 = vunpack.c.l.b16 %v183
    %v287 = vunpack.c.h.b16 %v183
    %v288 = vunpack.c.l.b16 %v184
    %v289 = vunpack.c.h.b16 %v184
    %v290 = vunpack.c.l.b16 %v185
    %v291 = vunpack.c.h.b16 %v185
    %v292 = vunpack.c.l.b16 %v186
    %v293 = vunpack.c.h.b16 %v186
    %v294 = vunpack.c.l.b16 %v187
    %v295 = vunpack.c.h.b16 %v187
    %v296 = vpack.c.b16 %v234, %v232
    %v297 = vpack.c.b16 %v235, %v233
    %v298 = vpack.c.b16 %v238, %v236
    %v299 = vpack.c.b16 %v239, %v237
    %v300 = vpack.c.b16 %v242, %v240
    %v301 = vpack.c.b16 %v243, %v241
    %v302 = vpack.c.b16 %v246, %v244
    %v303 = vpack.c.b16 %v247, %v245
    %v304 = vpack.c.b16 %v250, %v248
    %v305 = vpack.c.b16 %v251, %v249
    %v306 = vpack.c.b16 %v254, %v252
    %v307 = vpack.c.b16 %v255, %v253
    %v308 = vpack.c.b16 %v258, %v256
    %v309 = vpack.c.b16 %v259, %v257
    %v310 = vpack.c.b16 %v262, %v260
    %v311 = vpack.c.b16 %v263, %v261
    %v312 = vpack.c.b16 %v266, %v264
    %v313 = vpack.c.b16 %v267, %v265
    %v314 = vpack.c.b16 %v270, %v268
    %v315 = vpack.c.b16 %v271, %v269
    %v316 = vpack.c.b16 %v274, %v272
    %v317 = vpack.c.b16 %v275, %v273
    %v318 = vpack.c.b16 %v278, %v276
    %v319 = vpack.c.b16 %v279, %v277
    %v320 = vpack.c.b16 %v282, %v280
    %v321 = vpack.c.b16 %v283, %v281
    %v322 = vpack.c.b16 %v286, %v284
    %v323 = vpack.c.b16 %v287, %v285
    %v324 = vpack.c.b16 %v290, %v288
    %v325 = vpack.c.b16 %v291, %v289
    %v326 = vpack.c.b16 %v294, %v292
    %v327 = vpack.c.b16 %v295, %v293
    %360 = vmatprep.subr.bf16.mxu0 %v297
    %361 = vmatpush1.bf16.msra.mxu0 %v296
    %362 = vmatprep.subr.bf16.mxu0 %v299
    %363 = vmatpush1.bf16.msra.mxu0 %v298
    %364 = vmatprep.subr.bf16.mxu0 %v301
    %365 = vmatpush1.bf16.msra.mxu0 %v300
    %366 = vmatprep.subr.bf16.mxu0 %v303
    %367 = vmatpush1.bf16.msra.mxu0 %v302
    %368 = vmatprep.subr.bf16.mxu0 %v305
    %369 = vmatpush1.bf16.msra.mxu0 %v304
    %370 = vmatprep.subr.bf16.mxu0 %v307
    %371 = vmatpush1.bf16.msra.mxu0 %v306
    %372 = vmatprep.subr.bf16.mxu0 %v309
    %373 = vmatpush1.bf16.msra.mxu0 %v308
    %374 = vmatprep.subr.bf16.mxu0 %v311
    %375 = vmatpush1.bf16.msra.mxu0 %v310
    %376 = vmatprep.subr.bf16.mxu0 %v313
    %377 = vmatpush1.bf16.msra.mxu0 %v312
    %378 = vmatprep.subr.bf16.mxu0 %v315
    %379 = vmatpush1.bf16.msra.mxu0 %v314
    %380 = vmatprep.subr.bf16.mxu0 %v317
    %381 = vmatpush1.bf16.msra.mxu0 %v316
    %382 = vmatprep.subr.bf16.mxu0 %v319
    %383 = vmatpush1.bf16.msra.mxu0 %v318
    %384 = vmatprep.subr.bf16.mxu0 %v321
    %385 = vmatpush1.bf16.msra.mxu0 %v320
    %386 = vmatprep.subr.bf16.mxu0 %v323
    %387 = vmatpush1.bf16.msra.mxu0 %v322
    %388 = vmatprep.subr.bf16.mxu0 %v325
    %389 = vmatpush1.bf16.msra.mxu0 %v324
    %390 = vmatprep.subr.bf16.mxu0 %v327
    %391 = vmatpush1.bf16.msra.mxu0 %v326
    %392 = vmatprep.mubr.bf16.mxu0 %v155
    %393 = vmatmul.mubr.bf16.gmra.mrb[0].mxu0 %v154
    %v394 = vpop.f32.mrb[0].mxu0
    %v395 = vadd.f32 %v193, %v394
    %v396 = vpop.f32.mrb[0].mxu0
    %v397 = vadd.f32 %v197, %v396
    %v398 = vpop.f32.mrb[0].mxu0
    %v399 = vpop.f32.mrb[0].mxu0
    %400 = vdwg.mxu0
    %v401 = vmax.f32 %v395, 0.0
    %v402 = vmax.f32 %v397, 0.0
    %v403 = vpack.c.bf16 %v401, %v401
    %v404 = vpack.c.bf16 %v402, %v402
    %v405 = vld [vmem:[#allocation8] sm:$0xff]
    %v406 = vld [vmem:[#allocation8 + $0x8] sm:$0xff]
    %v407 = vld [vmem:[#allocation8 + $0x10] sm:$0xf]
    %v408 = vld [vmem:[#allocation8 + $0x14] sm:$0xff]
    %v409 = vld [vmem:[#allocation8 + $0x1c] sm:$0xff]
    %v410 = vld [vmem:[#allocation8 + $0x24] sm:$0xf]
    %v411 = vld [vmem:[#allocation8 + $0x28] sm:$0xff]
    %v412 = vld [vmem:[#allocation8 + $0x30] sm:$0xff]
    %v413 = vld [vmem:[#allocation8 + $0x38] sm:$0xf]
    %v414 = vld [vmem:[#allocation8 + $0x3c] sm:$0xff]
    %v415 = vld [vmem:[#allocation8 + $0x44] sm:$0xff]
    %v416 = vld [vmem:[#allocation8 + $0x4c] sm:$0xf]
    %v417 = vld [vmem:[#allocation8 + $0x50] sm:$0xff]
    %v418 = vld [vmem:[#allocation8 + $0x58] sm:$0xff]
    %v419 = vld [vmem:[#allocation8 + $0x60] sm:$0xf]
    %v420 = vld [vmem:[#allocation8 + $0x64] sm:$0xff]
    %v421 = vld [vmem:[#allocation8 + $0x6c] sm:$0xff]
    %v422 = vld [vmem:[#allocation8 + $0x74] sm:$0xf]
    %v423 = vld [vmem:[#allocation8 + $0x78] sm:$0xff]
    %v424 = vld [vmem:[#allocation8 + $0x80] sm:$0xff]
    %v425 = vld [vmem:[#allocation8 + $0x88] sm:$0xf]
    %v426 = vld [vmem:[#allocation8 + $0x8c] sm:$0xff]
    %v427 = vld [vmem:[#allocation8 + $0x94] sm:$0xff]
    %v428 = vld [vmem:[#allocation8 + $0x9c] sm:$0xf]
    %v429 = vld [vmem:[#allocation8 + $0xa0] sm:$0xff]
    %v430 = vld [vmem:[#allocation8 + $0xa8] sm:$0xff]
    %v431 = vld [vmem:[#allocation8 + $0xb0] sm:$0xf]
    %v432 = vld [vmem:[#allocation8 + $0xb4] sm:$0xff]
    %v433 = vld [vmem:[#allocation8 + $0xbc] sm:$0xff]
    %v434 = vld [vmem:[#allocation8 + $0xc4] sm:$0xf]
    %v435 = vld [vmem:[#allocation8 + $0xc8] sm:$0xff]
    %v436 = vld [vmem:[#allocation8 + $0xd0] sm:$0xff]
    %v437 = vld [vmem:[#allocation8 + $0xd8] sm:$0xf]
    %v438 = vld [vmem:[#allocation8 + $0xdc] sm:$0xff]
    %v439 = vld [vmem:[#allocation8 + $0xe4] sm:$0xff]
    %v440 = vld [vmem:[#allocation8 + $0xec] sm:$0xf]
    %v441 = vld [vmem:[#allocation8 + $0xf0] sm:$0xff]
    %v442 = vld [vmem:[#allocation8 + $0xf8] sm:$0xff]
    %v443 = vld [vmem:[#allocation8 + $0x100] sm:$0xf]
    %v444 = vld [vmem:[#allocation8 + $0x104] sm:$0xff]
    %v445 = vld [vmem:[#allocation8 + $0x10c] sm:$0xff]
    %v446 = vld [vmem:[#allocation8 + $0x114] sm:$0xf]
    %v447 = vld [vmem:[#allocation8 + $0x118] sm:$0xff]
    %v448 = vld [vmem:[#allocation8 + $0x120] sm:$0xff]
    %v449 = vld [vmem:[#allocation8 + $0x128] sm:$0xf]
    %v450 = vld [vmem:[#allocation8 + $0x12c] sm:$0xff]
    %v451 = vld [vmem:[#allocation8 + $0x134] sm:$0xff]
    %v452 = vld [vmem:[#allocation8 + $0x13c] sm:$0xf]
    %v453 = vld [vmem:[#allocation8 + $0x140] sm:$0xff]
    %v454 = vld [vmem:[#allocation8 + $0x148] sm:$0xff]
    %v455 = vld [vmem:[#allocation8 + $0x150] sm:$0xf]
    %v456 = vld [vmem:[#allocation8 + $0x154] sm:$0xff]
    %v457 = vld [vmem:[#allocation8 + $0x15c] sm:$0xff]
    %v458 = vld [vmem:[#allocation8 + $0x164] sm:$0xf]
    %v459 = vld [vmem:[#allocation8 + $0x168] sm:$0xff]
    %v460 = vld [vmem:[#allocation8 + $0x170] sm:$0xff]
    %v461 = vld [vmem:[#allocation8 + $0x178] sm:$0xf]
    %v462 = vld [vmem:[#allocation8 + $0x17c] sm:$0xff]
    %v463 = vld [vmem:[#allocation8 + $0x184] sm:$0xff]
    %v464 = vld [vmem:[#allocation8 + $0x18c] sm:$0xf]
    %v465 = vld [vmem:[#allocation8 + $0x190] sm:$0xff]
    %v466 = vld [vmem:[#allocation8 + $0x198] sm:$0xff]
    %v467 = vld [vmem:[#allocation8 + $0x1a0] sm:$0xf]
    %v468 = vld [vmem:[#allocation8 + $0x1a4] sm:$0xff]
    %v469 = vld [vmem:[#allocation8 + $0x1ac] sm:$0xff]
    %v470 = vld [vmem:[#allocation8 + $0x1b4] sm:$0xf]
    %v471 = vld [vmem:[#allocation8 + $0x1b8] sm:$0xff]
    %v472 = vld [vmem:[#allocation8 + $0x1c0] sm:$0xff]
    %v473 = vld [vmem:[#allocation8 + $0x1c8] sm:$0xf]
    %v474 = vld [vmem:[#allocation8 + $0x1cc] sm:$0xff]
    %v475 = vld [vmem:[#allocation8 + $0x1d4] sm:$0xff]
    %v476 = vld [vmem:[#allocation8 + $0x1dc] sm:$0xf]
    %v477 = vld [vmem:[#allocation8 + $0x1e0] sm:$0xff]
    %v478 = vld [vmem:[#allocation8 + $0x1e8] sm:$0xff]
    %v479 = vld [vmem:[#allocation8 + $0x1f0] sm:$0xf]
    %v480 = vld [vmem:[#allocation8 + $0x1f4] sm:$0xff]
    %v481 = vld [vmem:[#allocation8 + $0x1fc] sm:$0xff]
    %v482 = vld [vmem:[#allocation8 + $0x204] sm:$0xf]
    %v483 = vld [vmem:[#allocation8 + $0x208] sm:$0xff]
    %v484 = vld [vmem:[#allocation8 + $0x210] sm:$0xff]
    %v485 = vld [vmem:[#allocation8 + $0x218] sm:$0xf]
    %v486 = vld [vmem:[#allocation8 + $0x21c] sm:$0xff]
    %v487 = vld [vmem:[#allocation8 + $0x224] sm:$0xff]
    %v488 = vld [vmem:[#allocation8 + $0x22c] sm:$0xf]
    %v489 = vld [vmem:[#allocation8 + $0x230] sm:$0xff]
    %v490 = vld [vmem:[#allocation8 + $0x238] sm:$0xff]
    %v491 = vld [vmem:[#allocation8 + $0x240] sm:$0xf]
    %v492 = vld [vmem:[#allocation8 + $0x244] sm:$0xff]
    %v493 = vld [vmem:[#allocation8 + $0x24c] sm:$0xff]
    %v494 = vld [vmem:[#allocation8 + $0x254] sm:$0xf]
    %v495 = vld [vmem:[#allocation8 + $0x258] sm:$0xff]
    %v496 = vld [vmem:[#allocation8 + $0x260] sm:$0xff]
    %v497 = vld [vmem:[#allocation8 + $0x268] sm:$0xf]
    %v498 = vld [vmem:[#allocation8 + $0x26c] sm:$0xff]
    %v499 = vld [vmem:[#allocation8 + $0x274] sm:$0xff]
    %v500 = vld [vmem:[#allocation8 + $0x27c] sm:$0xf]
    %v501 = vld [vmem:[%s6] sm:$0x1f]
    %v503 = vlaneseq
    %v504 = vshrl.u32 %v503, 7
    %v505 = vsub.s32 0, %v504
    %v506 = vrot.slane %v501, %v505
    %v507 = vlaneseq
    %v508 = vshrl.u32 %v507, 7
    %v509 = vsub.s32 1, %v508
    %v510 = vrot.slane %v501, %v509
    %v511 = vlaneseq
    %v512 = vshrl.u32 %v511, 7
    %v513 = vsub.s32 2, %v512
    %v514 = vrot.slane %v501, %v513
    %v515 = vlaneseq
    %v516 = vshrl.u32 %v515, 7
    %v517 = vsub.s32 3, %v516
    %v518 = vrot.slane %v501, %v517
    %v519 = vlaneseq
    %v520 = vshrl.u32 %v519, 7
    %v521 = vsub.s32 4, %v520
    %v522 = vrot.slane %v501, %v521
    %v624 = vunpack.c.l.b16 %v405
    %v625 = vunpack.c.h.b16 %v405
    %v626 = vunpack.c.l.b16 %v406
    %v627 = vunpack.c.h.b16 %v406
    %v628 = vunpack.c.l.b16 %v407
    %v629 = vunpack.c.l.b16 %v408
    %v630 = vunpack.c.h.b16 %v408
    %v631 = vunpack.c.l.b16 %v409
    %v632 = vunpack.c.h.b16 %v409
    %v633 = vunpack.c.l.b16 %v410
    %v634 = vunpack.c.l.b16 %v411
    %v635 = vunpack.c.h.b16 %v411
    %v636 = vunpack.c.l.b16 %v412
    %v637 = vunpack.c.h.b16 %v412
    %v638 = vunpack.c.l.b16 %v413
    %v639 = vunpack.c.l.b16 %v414
    %v640 = vunpack.c.h.b16 %v414
    %v641 = vunpack.c.l.b16 %v415
    %v642 = vunpack.c.h.b16 %v415
    %v643 = vunpack.c.l.b16 %v416
    %v644 = vunpack.c.l.b16 %v417
    %v645 = vunpack.c.h.b16 %v417
    %v646 = vunpack.c.l.b16 %v418
    %v647 = vunpack.c.h.b16 %v418
    %v648 = vunpack.c.l.b16 %v419
    %v649 = vunpack.c.l.b16 %v420
    %v650 = vunpack.c.h.b16 %v420
    %v651 = vunpack.c.l.b16 %v421
    %v652 = vunpack.c.h.b16 %v421
    %v653 = vunpack.c.l.b16 %v422
    %v654 = vunpack.c.l.b16 %v423
    %v655 = vunpack.c.h.b16 %v423
    %v656 = vunpack.c.l.b16 %v424
    %v657 = vunpack.c.h.b16 %v424
    %v658 = vunpack.c.l.b16 %v425
    %v659 = vunpack.c.l.b16 %v426
    %v660 = vunpack.c.h.b16 %v426
    %v661 = vunpack.c.l.b16 %v427
    %v662 = vunpack.c.h.b16 %v427
    %v663 = vunpack.c.l.b16 %v428
    %v664 = vunpack.c.l.b16 %v429
    %v665 = vunpack.c.h.b16 %v429
    %v666 = vunpack.c.l.b16 %v430
    %v667 = vunpack.c.h.b16 %v430
    %v668 = vunpack.c.l.b16 %v431
    %v669 = vunpack.c.l.b16 %v432
    %v670 = vunpack.c.h.b16 %v432
    %v671 = vunpack.c.l.b16 %v433
    %v672 = vunpack.c.h.b16 %v433
    %v673 = vunpack.c.l.b16 %v434
    %v674 = vunpack.c.l.b16 %v435
    %v675 = vunpack.c.h.b16 %v435
    %v676 = vunpack.c.l.b16 %v436
    %v677 = vunpack.c.h.b16 %v436
    %v678 = vunpack.c.l.b16 %v437
    %v679 = vunpack.c.l.b16 %v438
    %v680 = vunpack.c.h.b16 %v438
    %v681 = vunpack.c.l.b16 %v439
    %v682 = vunpack.c.h.b16 %v439
    %v683 = vunpack.c.l.b16 %v440
    %v684 = vunpack.c.l.b16 %v441
    %v685 = vunpack.c.h.b16 %v441
    %v686 = vunpack.c.l.b16 %v442
    %v687 = vunpack.c.h.b16 %v442
    %v688 = vunpack.c.l.b16 %v443
    %v689 = vunpack.c.l.b16 %v444
    %v690 = vunpack.c.h.b16 %v444
    %v691 = vunpack.c.l.b16 %v445
    %v692 = vunpack.c.h.b16 %v445
    %v693 = vunpack.c.l.b16 %v446
    %v694 = vunpack.c.l.b16 %v447
    %v695 = vunpack.c.h.b16 %v447
    %v696 = vunpack.c.l.b16 %v448
    %v697 = vunpack.c.h.b16 %v448
    %v698 = vunpack.c.l.b16 %v449
    %v699 = vunpack.c.l.b16 %v450
    %v700 = vunpack.c.h.b16 %v450
    %v701 = vunpack.c.l.b16 %v451
    %v702 = vunpack.c.h.b16 %v451
    %v703 = vunpack.c.l.b16 %v452
    %v704 = vunpack.c.l.b16 %v453
    %v705 = vunpack.c.h.b16 %v453
    %v706 = vunpack.c.l.b16 %v454
    %v707 = vunpack.c.h.b16 %v454
    %v708 = vunpack.c.l.b16 %v455
    %v709 = vunpack.c.l.b16 %v456
    %v710 = vunpack.c.h.b16 %v456
    %v711 = vunpack.c.l.b16 %v457
    %v712 = vunpack.c.h.b16 %v457
    %v713 = vunpack.c.l.b16 %v458
    %v714 = vunpack.c.l.b16 %v459
    %v715 = vunpack.c.h.b16 %v459
    %v716 = vunpack.c.l.b16 %v460
    %v717 = vunpack.c.h.b16 %v460
    %v718 = vunpack.c.l.b16 %v461
    %v719 = vunpack.c.l.b16 %v462
    %v720 = vunpack.c.h.b16 %v462
    %v721 = vunpack.c.l.b16 %v463
    %v722 = vunpack.c.h.b16 %v463
    %v723 = vunpack.c.l.b16 %v464
    %v724 = vunpack.c.l.b16 %v465
    %v725 = vunpack.c.h.b16 %v465
    %v726 = vunpack.c.l.b16 %v466
    %v727 = vunpack.c.h.b16 %v466
    %v728 = vunpack.c.l.b16 %v467
    %v729 = vunpack.c.l.b16 %v468
    %v730 = vunpack.c.h.b16 %v468
    %v731 = vunpack.c.l.b16 %v469
    %v732 = vunpack.c.h.b16 %v469
    %v733 = vunpack.c.l.b16 %v470
    %v734 = vunpack.c.l.b16 %v471
    %v735 = vunpack.c.h.b16 %v471
    %v736 = vunpack.c.l.b16 %v472
    %v737 = vunpack.c.h.b16 %v472
    %v738 = vunpack.c.l.b16 %v473
    %v739 = vunpack.c.l.b16 %v474
    %v740 = vunpack.c.h.b16 %v474
    %v741 = vunpack.c.l.b16 %v475
    %v742 = vunpack.c.h.b16 %v475
    %v743 = vunpack.c.l.b16 %v476
    %v744 = vunpack.c.l.b16 %v477
    %v745 = vunpack.c.h.b16 %v477
    %v746 = vunpack.c.l.b16 %v478
    %v747 = vunpack.c.h.b16 %v478
    %v748 = vunpack.c.l.b16 %v479
    %v749 = vunpack.c.l.b16 %v480
    %v750 = vunpack.c.h.b16 %v480
    %v751 = vunpack.c.l.b16 %v481
    %v752 = vunpack.c.h.b16 %v481
    %v753 = vunpack.c.l.b16 %v482
    %v754 = vunpack.c.l.b16 %v483
    %v755 = vunpack.c.h.b16 %v483
    %v756 = vunpack.c.l.b16 %v484
    %v757 = vunpack.c.h.b16 %v484
    %v758 = vunpack.c.l.b16 %v485
    %v759 = vunpack.c.l.b16 %v486
    %v760 = vunpack.c.h.b16 %v486
    %v761 = vunpack.c.l.b16 %v487
    %v762 = vunpack.c.h.b16 %v487
    %v763 = vunpack.c.l.b16 %v488
    %v764 = vunpack.c.l.b16 %v489
    %v765 = vunpack.c.h.b16 %v489
    %v766 = vunpack.c.l.b16 %v490
    %v767 = vunpack.c.h.b16 %v490
    %v768 = vunpack.c.l.b16 %v491
    %v769 = vunpack.c.l.b16 %v492
    %v770 = vunpack.c.h.b16 %v492
    %v771 = vunpack.c.l.b16 %v493
    %v772 = vunpack.c.h.b16 %v493
    %v773 = vunpack.c.l.b16 %v494
    %v774 = vunpack.c.l.b16 %v495
    %v775 = vunpack.c.h.b16 %v495
    %v776 = vunpack.c.l.b16 %v496
    %v777 = vunpack.c.h.b16 %v496
    %v778 = vunpack.c.l.b16 %v497
    %v779 = vunpack.c.l.b16 %v498
    %v780 = vunpack.c.h.b16 %v498
    %v781 = vunpack.c.l.b16 %v499
    %v782 = vunpack.c.h.b16 %v499
    %v783 = vunpack.c.l.b16 %v500
    %v784 = vpack.c.b16 %v629, %v624
    %v785 = vpack.c.b16 %v630, %v625
    %v786 = vpack.c.b16 %v631, %v626
    %v787 = vpack.c.b16 %v632, %v627
    %v788 = vpack.c.b16 %v633, %v628
    %v789 = vpack.c.b16 %v639, %v634
    %v790 = vpack.c.b16 %v640, %v635
    %v791 = vpack.c.b16 %v641, %v636
    %v792 = vpack.c.b16 %v642, %v637
    %v793 = vpack.c.b16 %v643, %v638
    %v794 = vpack.c.b16 %v649, %v644
    %v795 = vpack.c.b16 %v650, %v645
    %v796 = vpack.c.b16 %v651, %v646
    %v797 = vpack.c.b16 %v652, %v647
    %v798 = vpack.c.b16 %v653, %v648
    %v799 = vpack.c.b16 %v659, %v654
    %v800 = vpack.c.b16 %v660, %v655
    %v801 = vpack.c.b16 %v661, %v656
    %v802 = vpack.c.b16 %v662, %v657
    %v803 = vpack.c.b16 %v663, %v658
    %v804 = vpack.c.b16 %v669, %v664
    %v805 = vpack.c.b16 %v670, %v665
    %v806 = vpack.c.b16 %v671, %v666
    %v807 = vpack.c.b16 %v672, %v667
    %v808 = vpack.c.b16 %v673, %v668
    %v809 = vpack.c.b16 %v679, %v674
    %v810 = vpack.c.b16 %v680, %v675
    %v811 = vpack.c.b16 %v681, %v676
    %v812 = vpack.c.b16 %v682, %v677
    %v813 = vpack.c.b16 %v683, %v678
    %v814 = vpack.c.b16 %v689, %v684
    %v815 = vpack.c.b16 %v690, %v685
    %v816 = vpack.c.b16 %v691, %v686
    %v817 = vpack.c.b16 %v692, %v687
    %v818 = vpack.c.b16 %v693, %v688
    %v819 = vpack.c.b16 %v699, %v694
    %v820 = vpack.c.b16 %v700, %v695
    %v821 = vpack.c.b16 %v701, %v696
    %v822 = vpack.c.b16 %v702, %v697
    %v823 = vpack.c.b16 %v703, %v698
    %v824 = vpack.c.b16 %v709, %v704
    %v825 = vpack.c.b16 %v710, %v705
    %v826 = vpack.c.b16 %v711, %v706
    %v827 = vpack.c.b16 %v712, %v707
    %v828 = vpack.c.b16 %v713, %v708
    %v829 = vpack.c.b16 %v719, %v714
    %v830 = vpack.c.b16 %v720, %v715
    %v831 = vpack.c.b16 %v721, %v716
    %v832 = vpack.c.b16 %v722, %v717
    %v833 = vpack.c.b16 %v723, %v718
    %v834 = vpack.c.b16 %v729, %v724
    %v835 = vpack.c.b16 %v730, %v725
    %v836 = vpack.c.b16 %v731, %v726
    %v837 = vpack.c.b16 %v732, %v727
    %v838 = vpack.c.b16 %v733, %v728
    %v839 = vpack.c.b16 %v739, %v734
    %v840 = vpack.c.b16 %v740, %v735
    %v841 = vpack.c.b16 %v741, %v736
    %v842 = vpack.c.b16 %v742, %v737
    %v843 = vpack.c.b16 %v743, %v738
    %v844 = vpack.c.b16 %v749, %v744
    %v845 = vpack.c.b16 %v750, %v745
    %v846 = vpack.c.b16 %v751, %v746
    %v847 = vpack.c.b16 %v752, %v747
    %v848 = vpack.c.b16 %v753, %v748
    %v849 = vpack.c.b16 %v759, %v754
    %v850 = vpack.c.b16 %v760, %v755
    %v851 = vpack.c.b16 %v761, %v756
    %v852 = vpack.c.b16 %v762, %v757
    %v853 = vpack.c.b16 %v763, %v758
    %v854 = vpack.c.b16 %v769, %v764
    %v855 = vpack.c.b16 %v770, %v765
    %v856 = vpack.c.b16 %v771, %v766
    %v857 = vpack.c.b16 %v772, %v767
    %v858 = vpack.c.b16 %v773, %v768
    %v859 = vpack.c.b16 %v779, %v774
    %v860 = vpack.c.b16 %v780, %v775
    %v861 = vpack.c.b16 %v781, %v776
    %v862 = vpack.c.b16 %v782, %v777
    %v863 = vpack.c.b16 %v783, %v778
    %944 = vmatprep.subr.bf16.mxu0 %v785
    %945 = vmatpush1.bf16.msra.mxu0 %v784
    %946 = vmatprep.subr.bf16.mxu0 %v790
    %947 = vmatpush1.bf16.msra.mxu0 %v789
    %948 = vmatprep.subr.bf16.mxu0 %v795
    %949 = vmatpush1.bf16.msra.mxu0 %v794
    %950 = vmatprep.subr.bf16.mxu0 %v800
    %951 = vmatpush1.bf16.msra.mxu0 %v799
    %952 = vmatprep.subr.bf16.mxu0 %v805
    %953 = vmatpush1.bf16.msra.mxu0 %v804
    %954 = vmatprep.subr.bf16.mxu0 %v810
    %955 = vmatpush1.bf16.msra.mxu0 %v809
    %956 = vmatprep.subr.bf16.mxu0 %v815
    %957 = vmatpush1.bf16.msra.mxu0 %v814
    %958 = vmatprep.subr.bf16.mxu0 %v820
    %959 = vmatpush1.bf16.msra.mxu0 %v819
    %960 = vmatprep.subr.bf16.mxu0 %v825
    %961 = vmatpush1.bf16.msra.mxu0 %v824
    %962 = vmatprep.subr.bf16.mxu0 %v830
    %963 = vmatpush1.bf16.msra.mxu0 %v829
    %964 = vmatprep.subr.bf16.mxu0 %v835
    %965 = vmatpush1.bf16.msra.mxu0 %v834
    %966 = vmatprep.subr.bf16.mxu0 %v840
    %967 = vmatpush1.bf16.msra.mxu0 %v839
    %968 = vmatprep.subr.bf16.mxu0 %v845
    %969 = vmatpush1.bf16.msra.mxu0 %v844
    %970 = vmatprep.subr.bf16.mxu0 %v850
    %971 = vmatpush1.bf16.msra.mxu0 %v849
    %972 = vmatprep.subr.bf16.mxu0 %v855
    %973 = vmatpush1.bf16.msra.mxu0 %v854
    %974 = vmatprep.subr.bf16.mxu0 %v860
    %975 = vmatpush1.bf16.msra.mxu0 %v859
    %976 = vmatprep.mubr.bf16.mxu0 %v404
    %977 = vmatmul.mubr.bf16.gmra.mrb[0].mxu0 %v403
    %v978 = vpop.f32.mrb[0].mxu0
    %v979 = vadd.f32 %v506, %v978
    %v980 = vpop.f32.mrb[0].mxu0
    %v981 = vadd.f32 %v510, %v980
    %v982 = vpop.f32.mrb[0].mxu0
    %v983 = vpop.f32.mrb[0].mxu0
    %984 = vdwg.mxu0
    %985 = vmatprep.subr.bf16.mxu0 %v787
    %986 = vmatpush1.bf16.msra.mxu0 %v786
    %987 = vmatprep.subr.bf16.mxu0 %v792
    %988 = vmatpush1.bf16.msra.mxu0 %v791
    %989 = vmatprep.subr.bf16.mxu0 %v797
    %990 = vmatpush1.bf16.msra.mxu0 %v796
    %991 = vmatprep.subr.bf16.mxu0 %v802
    %992 = vmatpush1.bf16.msra.mxu0 %v801
    %993 = vmatprep.subr.bf16.mxu0 %v807
    %994 = vmatpush1.bf16.msra.mxu0 %v806
    %995 = vmatprep.subr.bf16.mxu0 %v812
    %996 = vmatpush1.bf16.msra.mxu0 %v811
    %997 = vmatprep.subr.bf16.mxu0 %v817
    %998 = vmatpush1.bf16.msra.mxu0 %v816
    %999 = vmatprep.subr.bf16.mxu0 %v822
    %1000 = vmatpush1.bf16.msra.mxu0 %v821
    %1001 = vmatprep.subr.bf16.mxu0 %v827
    %1002 = vmatpush1.bf16.msra.mxu0 %v826
    %1003 = vmatprep.subr.bf16.mxu0 %v832
    %1004 = vmatpush1.bf16.msra.mxu0 %v831
    %1005 = vmatprep.subr.bf16.mxu0 %v837
    %1006 = vmatpush1.bf16.msra.mxu0 %v836
    %1007 = vmatprep.subr.bf16.mxu0 %v842
    %1008 = vmatpush1.bf16.msra.mxu0 %v841
    %1009 = vmatprep.subr.bf16.mxu0 %v847
    %1010 = vmatpush1.bf16.msra.mxu0 %v846
    %1011 = vmatprep.subr.bf16.mxu0 %v852
    %1012 = vmatpush1.bf16.msra.mxu0 %v851
    %1013 = vmatprep.subr.bf16.mxu0 %v857
    %1014 = vmatpush1.bf16.msra.mxu0 %v856
    %1015 = vmatprep.subr.bf16.mxu0 %v862
    %1016 = vmatpush1.bf16.msra.mxu0 %v861
    %1017 = vmatprep.mubr.bf16.mxu0 %v404
    %1018 = vmatmul.mubr.bf16.gmra.mrb[0].mxu0 %v403
    %v1019 = vpop.f32.mrb[0].mxu0
    %v1020 = vadd.f32 %v514, %v1019
    %v1021 = vpop.f32.mrb[0].mxu0
    %v1022 = vadd.f32 %v518, %v1021
    %v1023 = vpop.f32.mrb[0].mxu0
    %v1024 = vpop.f32.mrb[0].mxu0
    %1025 = vdwg.mxu0
    %1026 = vmatprep.subr.bf16.mxu0 0
    %1027 = vmatpush1.bf16.msra.mxu0 %v788
    %1028 = vmatprep.subr.bf16.mxu0 0
    %1029 = vmatpush1.bf16.msra.mxu0 %v793
    %1030 = vmatprep.subr.bf16.mxu0 0
    %1031 = vmatpush1.bf16.msra.mxu0 %v798
    %1032 = vmatprep.subr.bf16.mxu0 0
    %1033 = vmatpush1.bf16.msra.mxu0 %v803
    %1034 = vmatprep.subr.bf16.mxu0 0
    %1035 = vmatpush1.bf16.msra.mxu0 %v808
    %1036 = vmatprep.subr.bf16.mxu0 0
    %1037 = vmatpush1.bf16.msra.mxu0 %v813
    %1038 = vmatprep.subr.bf16.mxu0 0
    %1039 = vmatpush1.bf16.msra.mxu0 %v818
    %1040 = vmatprep.subr.bf16.mxu0 0
    %1041 = vmatpush1.bf16.msra.mxu0 %v823
    %1042 = vmatprep.subr.bf16.mxu0 0
    %1043 = vmatpush1.bf16.msra.mxu0 %v828
    %1044 = vmatprep.subr.bf16.mxu0 0
    %1045 = vmatpush1.bf16.msra.mxu0 %v833
    %1046 = vmatprep.subr.bf16.mxu0 0
    %1047 = vmatpush1.bf16.msra.mxu0 %v838
    %1048 = vmatprep.subr.bf16.mxu0 0
    %1049 = vmatpush1.bf16.msra.mxu0 %v843
    %1050 = vmatprep.subr.bf16.mxu0 0
    %1051 = vmatpush1.bf16.msra.mxu0 %v848
    %1052 = vmatprep.subr.bf16.mxu0 0
    %1053 = vmatpush1.bf16.msra.mxu0 %v853
    %1054 = vmatprep.subr.bf16.mxu0 0
    %1055 = vmatpush1.bf16.msra.mxu0 %v858
    %1056 = vmatprep.subr.bf16.mxu0 0
    %1057 = vmatpush1.bf16.msra.mxu0 %v863
    %1058 = vmatprep.mubr.bf16.mxu0 %v404
    %1059 = vmatmul.mubr.bf16.gmra.mrb[0].mxu0 %v403
    %v1060 = vpop.f32.mrb[0].mxu0
    %v1061 = vadd.f32 %v522, %v1060
    %v1062 = vpop.f32.mrb[0].mxu0
    %v1063 = vpop.f32.mrb[0].mxu0
    %v1064 = vpop.f32.mrb[0].mxu0
    %1065 = vdwg.mxu0
    %v1066 = vadd.f32 %v981, %v1020
    %v1067 = vadd.f32 %v1066, %v1022
    %v1068 = vadd.f32 %v1067, %v1061
    %v1069 = vmul.f32 %v1068, 0.25
    %v1070 = vsub.f32 %v979, %v1069
    %v1071 = vadd.f32 %v1070, %v981
    %1072 = vmax.xlane.f32.xlu0 %v1071
    %v1073 = vpop.xlane.xlu0 %1072
    %v1074 = vsub.f32 %v1071, %v1073
    %v1075 = vmul.f32 %v1074, 1.442695
    %v1076 = vpow.pop %v1075
    %1077 = vadd.xlane.f32.xlu0 %v1076
    %v1078 = vpop.xlane.xlu0 %1077
    %v1079 = vrcp.pop %v1078
    %v1080 = vmul.f32 %v1076, %v1079
    %1081 = vst [vmem:[#allocation10] sm:$0xff] %v1080
    %v1082 = vadd.f32 %v1070, %v1020
    %1083 = vmax.xlane.f32.xlu0 %v1082
    %v1084 = vpop.xlane.xlu0 %1083
    %v1085 = vsub.f32 %v1082, %v1084
    %v1086 = vmul.f32 %v1085, 1.442695
    %v1087 = vpow.pop %v1086
    %1088 = vadd.xlane.f32.xlu0 %v1087
    %v1089 = vpop.xlane.xlu0 %1088
    %v1090 = vrcp.pop %v1089
    %v1091 = vmul.f32 %v1087, %v1090
    %1092 = vst [vmem:[#allocation10 + $0x8] sm:$0xff] %v1091
    %v1093 = vadd.f32 %v1070, %v1022
    %1094 = vmax.xlane.f32.xlu0 %v1093
    %v1095 = vpop.xlane.xlu0 %1094
    %v1096 = vsub.f32 %v1093, %v1095
    %v1097 = vmul.f32 %v1096, 1.442695
    %v1098 = vpow.pop %v1097
    %1099 = vadd.xlane.f32.xlu0 %v1098
    %v1100 = vpop.xlane.xlu0 %1099
    %v1101 = vrcp.pop %v1100
    %v1102 = vmul.f32 %v1098, %v1101
    %1103 = vst [vmem:[#allocation10 + $0x10] sm:$0xff] %v1102
    %v1104 = vadd.f32 %v1070, %v1061
    %1105 = vmax.xlane.f32.xlu0 %v1104
    %v1106 = vpop.xlane.xlu0 %1105
    %v1107 = vsub.f32 %v1104, %v1106
    %v1108 = vmul.f32 %v1107, 1.442695
    %v1109 = vpow.pop %v1108
    %1110 = vadd.xlane.f32.xlu0 %v1109
    %v1111 = vpop.xlane.xlu0 %1110
    %v1112 = vrcp.pop %v1111
    %v1113 = vmul.f32 %v1109, %v1112
    %1114 = vst [vmem:[#allocation10 + $0x18] sm:$0xff] %v1113
    // Predicated region
    $region46: #{tpu_custom_call.1} parent=1 // pred_check
      _
    $region47: #{tpu_custom_call.1} parent=1 // pred_check_branch
      %1116 = sbr.rel (0) target = $region49
    $region48: #{tpu_custom_call.1} parent=1 // pred_region
      %s1118 = ssub.s32 512, 512
      %1119 = vsyncadd [#allocation4], %s1118
      %s1121 = sshll.u32 [#allocation10], 4
      %s1122 = int_to_ptr.vmem [resolvable:$true] %s1121
      %1124 = dma.vmem_to_hbm [thread:$0]  %s1122, 512, %s7, [#allocation4]
    $region49: #{tpu_custom_call.1} parent=1 // pred_fallthru
      _
    // Predicated region
    $region50: #{tpu_custom_call.1} parent=1 // pred_check
      _
    $region51: #{tpu_custom_call.1} parent=1 // pred_check_branch
      %1126 = sbr.rel (0) target = $region53
    $region52: #{tpu_custom_call.1} parent=1 // pred_region
      %1127 = dma.done [#allocation4], 512
    $region53: #{tpu_custom_call.1} parent=1 // pred_fallthru
      _
    %1128 = vsyncpa [#allocation3], 1
    %1129 = vsyncpa [#allocation6], 1
    %1130 = vsyncpa [#allocation9], 1
    %1131 = vsyncpa [#allocation4], 1

</llo_original>
